<compile_context>
chip_gen: v7x
topology: tpu7x:2x2x1
jax: 0.10.0
libtpu: 0.0.40
codegen_flags: <defaults>
</compile_context>

<pallas_src>
import functools

import jax
import jax.numpy as jnp
from jax.experimental import pallas as pl
from jax.experimental.pallas import tpu as pltpu


# ----------------------------------------------------------------------------- helpers
def _round_up(x, m):
    return ((x + m - 1) // m) * m


def _pad2(a, rows, cols):
    return jnp.pad(a, ((0, rows - a.shape[0]), (0, cols - a.shape[1])))


def _pick_tile(dim, target):
    t = min(target, dim)
    while dim % t:
        t //= 2
    return max(t, 1)


# ------------------------------------------------------------------- fused matmul kernel
def _mm_epilogue_kernel(a_ref, b_ref, bias_ref, o_ref, acc_ref, *, apply_relu):
    """o = a @ b (+ bias, + optional ReLU), f32 accumulation over the K grid axis."""
    k = pl.program_id(2)

    @pl.when(k == 0)
    def _():
        acc_ref[...] = jnp.zeros_like(acc_ref)

    acc_ref[...] += jnp.dot(a_ref[...], b_ref[...],
                            preferred_element_type=jnp.float32)

    @pl.when(k == pl.num_programs(2) - 1)
    def _():
        y = acc_ref[...] + bias_ref[...]          # bias (and folded BN shift) fused here
        if apply_relu:
            y = jnp.maximum(y, 0.0)
        o_ref[...] = y.astype(o_ref.dtype)


def matmul_fused(a, b, bias, *, apply_relu, out_dtype):
    """a:[M,K] (bf16), b:[K,N] (bf16), bias:[1,N] (f32) -> [M,N] out_dtype."""
    M, K = a.shape
    K2, N = b.shape
    assert K == K2 and bias.shape == (1, N)
    # Modest tiles (<=256x512 bf16) comfortably fit the scoped VMEM of v5e/v6e *and*
    # v7x's 64 MiB even with double buffering + the f32 accumulator.
    tm = _pick_tile(M, 256)
    tn = _pick_tile(N, 256)
    tk = _pick_tile(K, 512)
    grid = (M // tm, N // tn, K // tk)

    kernel = functools.partial(_mm_epilogue_kernel, apply_relu=apply_relu)
    return pl.pallas_call(
        kernel,
        out_shape=jax.ShapeDtypeStruct((M, N), out_dtype),
        grid_spec=pltpu.PrefetchScalarGridSpec(
            num_scalar_prefetch=0,
            grid=grid,
            in_specs=[
                pl.BlockSpec((tm, tk), lambda i, j, k: (i, k)),
                pl.BlockSpec((tk, tn), lambda i, j, k: (k, j)),
                pl.BlockSpec((1, tn), lambda i, j, k: (0, j)),
            ],
            out_specs=pl.BlockSpec((tm, tn), lambda i, j, k: (i, j)),
            scratch_shapes=[pltpu.VMEM((tm, tn), jnp.float32)],
        ),
        compiler_params=pltpu.CompilerParams(
            dimension_semantics=("parallel", "parallel", "arbitrary")),
    )(a, b, bias)


# --------------------------------------------------------------------- KENN boost kernel
def _kenn_kernel(meta_ref, src_ref, dst_ref,          # SMEM scalar prefetch
                 z_ref, rel_ref,                      # VMEM inputs
                 zo_ref,                              # VMEM output (resident accumulator)
                 gs_ref, gd_ref,                      # VMEM scratch [TE, C]
                 *, clause_weight, edges_per_tile):
    t = pl.program_id(0)
    num_edges = meta_ref[0]

    @pl.when(t == 0)
    def _():
        zo_ref[...] = z_ref[...]                      # output starts as the input logits

    # 1) gather per-edge src/dst class rows (O(E*C) DMA-free VMEM row copies)
    def gather(i, carry):
        e = t * edges_per_tile + i
        s = src_ref[e]
        d = dst_ref[e]
        gs_ref[pl.ds(i, 1), :] = z_ref[pl.ds(s, 1), :]
        gd_ref[pl.ds(i, 1), :] = z_ref[pl.ds(d, 1), :]
        return carry
    jax.lax.fori_loop(0, edges_per_tile, gather, 0)

    # 2) vectorized Godel-t-conorm (softmax) boost over the edge tile, all in f32
    zs = gs_ref[...].astype(jnp.float32)
    zd = gd_ref[...].astype(jnp.float32)
    rb = rel_ref[...].astype(jnp.float32)
    l1 = -rb           # !Cite(x,y)
    l2 = -zs           # !c(x)
    l3 = zd            # c(y)
    m = jnp.maximum(jnp.maximum(l1, l2), l3)
    e1 = jnp.exp(l1 - m)
    e2 = jnp.exp(l2 - m)
    e3 = jnp.exp(l3 - m)
    inv = pl.reciprocal(e1 + e2 + e3, approx=True)    # EUP, off the VALU critical path
    row_ids = jax.lax.broadcasted_iota(jnp.int32, zs.shape, 0) + t * edges_per_tile
    valid = (row_ids < num_edges).astype(jnp.float32)
    gs_ref[...] = (-clause_weight) * e2 * inv * valid   # delta for c(src)
    gd_ref[...] = (clause_weight) * e3 * inv * valid    # delta for c(dst)
    # NOTE: the delta on the binary predicate is not needed (forward only returns z).

    # 3) scatter-add deltas back into the resident updated-z accumulator
    def scatter(i, carry):
        e = t * edges_per_tile + i
        s = src_ref[e]
        d = dst_ref[e]
        zo_ref[pl.ds(s, 1), :] = zo_ref[pl.ds(s, 1), :] + gs_ref[pl.ds(i, 1), :]
        zo_ref[pl.ds(d, 1), :] = zo_ref[pl.ds(d, 1), :] + gd_ref[pl.ds(i, 1), :]
        return carry
    jax.lax.fori_loop(0, edges_per_tile, scatter, 0)


def kenn_boost(z, src_idx, dst_idx, rel_bcast, num_edges, *, clause_weight,
               edges_per_tile=128):
    """One KENN relational layer: z:[n_pad,c_pad] f32 -> updated z."""
    n_pad, c_pad = z.shape
    e_pad = src_idx.shape[0]
    assert e_pad % edges_per_tile == 0
    grid = (e_pad // edges_per_tile,)
    meta = jnp.array([num_edges], jnp.int32)

    kernel = functools.partial(_kenn_kernel, clause_weight=float(clause_weight),
                               edges_per_tile=edges_per_tile)
    return pl.pallas_call(
        kernel,
        out_shape=jax.ShapeDtypeStruct((n_pad, c_pad), jnp.float32),
        grid_spec=pltpu.PrefetchScalarGridSpec(
            num_scalar_prefetch=3,                      # meta, src, dst -> SMEM
            grid=grid,
            in_specs=[
                pl.BlockSpec((n_pad, c_pad), lambda t, m, s, d: (0, 0)),          # z (resident)
                pl.BlockSpec((edges_per_tile, c_pad), lambda t, m, s, d: (t, 0)),  # rel tile
            ],
            out_specs=pl.BlockSpec((n_pad, c_pad), lambda t, m, s, d: (0, 0)),
            scratch_shapes=[pltpu.VMEM((edges_per_tile, c_pad), jnp.float32),
                            pltpu.VMEM((edges_per_tile, c_pad), jnp.float32)],
        ),
        compiler_params=pltpu.CompilerParams(
            dimension_semantics=("arbitrary",)),        # sequential scatter-accumulation
    )(meta, src_idx, dst_idx, z, rel_bcast)


# ----------------------------------------------------------------------- JAX glue (graph)
def _build_a_norm(edge_index, num_nodes, n_pad):
    """D^-1/2 (A + I) D^-1/2, densified and padded; bf16 halves its HBM/VMEM footprint."""
    src, dst = edge_index[0], edge_index[1]
    a = jnp.zeros((num_nodes, num_nodes), jnp.float32)
    a = a.at[dst, src].set(1.0)                         # message flows src -> dst (PyG)
    diag = jnp.arange(num_nodes)
    a = a.at[diag, diag].set(1.0)                       # add (remaining) self loops
    deg = jnp.sum(a, axis=1)
    dinv = jnp.where(deg > 0, 1.0 / jnp.sqrt(deg), 0.0)
    a_norm = a * dinv[:, None] * dinv[None, :]
    return _pad2(a_norm, n_pad, n_pad).astype(jnp.bfloat16)


def ke_gcn_forward(x, edge_index, relations, params, *, num_classes, clause_weights,
                   edges_per_tile=128):
    """Ke_GCN forward (inference). params: list of dicts with W:[in,out], b:[out] and,
    for non-final layers, BatchNorm1d running stats gamma/beta/mean/var."""
    N, F_in = x.shape
    E = edge_index.shape[1]
    n_pad = _round_up(N, 128)

    # Graph densification is plain-JAX glue; all hot-path math below runs in Pallas.
    a_norm = _build_a_norm(edge_index, N, n_pad)

    # ---- GCN stack: relu(BN(A @ (X @ W) + b)), BN folded into W/b at trace time ----
    h = _pad2(x, n_pad, _round_up(F_in, 128)).astype(jnp.bfloat16)
    L = len(params)
    for l, p in enumerate(params):
        W = p["W"].astype(jnp.float32)
        b = p["b"].astype(jnp.float32)
        is_last = (l == L - 1)
        if not is_last:                                  # fold inference BatchNorm1d
            scale = p["gamma"] / jnp.sqrt(p["var"] + 1e-5)
            W = W * scale[None, :]
            b = (b - p["mean"]) * scale + p["beta"]
        in_pad = h.shape[1]
        out_pad = _round_up(W.shape[1], 128)             # lane-dense hidden / class dims
        Wp = _pad2(W, in_pad, out_pad).astype(jnp.bfloat16)
        bp = jnp.pad(b, (0, out_pad - b.shape[0])).reshape(1, out_pad).astype(jnp.float32)
        zero_b = jnp.zeros((1, out_pad), jnp.float32)

        # 1) feature transform first (contracts the large F_in):  X @ W
        hw = matmul_fused(h, Wp, zero_b, apply_relu=False, out_dtype=jnp.bfloat16)
        # 2) aggregation with fused bias(+BN)(+ReLU) epilogue:    A_norm @ (XW) + b
        h = matmul_fused(a_norm, hw, bp, apply_relu=not is_last,
                         out_dtype=jnp.float32 if is_last else jnp.bfloat16)
    z = h                                                # [n_pad, c_pad] f32 logits

    # ---- KENN relational boost layers (O(E*C) gather/scatter, no dense [E,N] matmuls) ----
    c_pad = z.shape[1]
    e_pad = _round_up(max(E, 1), edges_per_tile)
    src = jnp.pad(edge_index[0].astype(jnp.int32), (0, e_pad - E))
    dst = jnp.pad(edge_index[1].astype(jnp.int32), (0, e_pad - E))
    rel = jnp.pad(relations.reshape(-1).astype(jnp.float32), (0, e_pad - E))
    rel_b = jnp.broadcast_to(rel[:, None], (e_pad, c_pad))
    for cw in clause_weights:
        z = kenn_boost(z, src, dst, rel_b, E, clause_weight=cw,
                       edges_per_tile=edges_per_tile)

    return z[:N, :num_classes]


# --------------------------------------------------------------------- pure-JAX reference
def _reference_forward(x, edge_index, relations, params, num_classes, clause_weights):
    N = x.shape[0]
    src, dst = edge_index[0], edge_index[1]
    a = jnp.zeros((N, N), jnp.float32).at[dst, src].set(1.0)
    diag = jnp.arange(N)
    a = a.at[diag, diag].set(1.0)
    deg = a.sum(axis=1)
    dinv = 1.0 / jnp.sqrt(deg)
    a_norm = a * dinv[:, None] * dinv[None, :]
    h = x
    L = len(params)
    for l, p in enumerate(params):
        h = a_norm @ (h @ p["W"]) + p["b"]
        if l < L - 1:
            h = (h - p["mean"]) / jnp.sqrt(p["var"] + 1e-5) * p["gamma"] + p["beta"]
            h = jnp.maximum(h, 0.0)
    z = h
    rel = relations.reshape(-1)
    for cw in clause_weights:
        zs, zd = z[src], z[dst]
        l1, l2, l3 = -rel[:, None], -zs, zd
        m = jnp.maximum(jnp.maximum(l1, l2), l3)
        e1, e2, e3 = jnp.exp(l1 - m), jnp.exp(l2 - m), jnp.exp(l3 - m)
        s = e1 + e2 + e3
        delta = (jnp.zeros_like(z).at[src].add(-cw * e2 / s)
                                  .at[dst].add(cw * e3 / s))
        z = z + delta
    return z[:, :num_classes]


# --------------------------------------------------------------------------------- demo
if __name__ == "__main__":
    key = jax.random.PRNGKey(0)
    N, F_IN, HID, C = 100, 200, 16, 7
    NUM_LAYERS, NUM_KENN_LAYERS = 3, 3
    E = 320
    CLAUSE_WEIGHT = 0.5

    ks = jax.random.split(key, 16)
    x = jax.random.normal(ks[0], (N, F_IN), jnp.float32)
    src = jax.random.randint(ks[1], (E,), 0, N)
    dst = jax.random.randint(ks[2], (E,), 0, N)
    edge_index = jnp.stack([src, dst]).astype(jnp.int32)
    relations = jnp.ones((E,), jnp.float32)   # T.RelationsAttribute() binary preactivations

    dims = [F_IN] + [HID] * (NUM_LAYERS - 1) + [C]
    params = []
    for l in range(NUM_LAYERS):
        kw, kb = jax.random.split(ks[3 + l])
        entry = {
            "W": 0.1 * jax.random.normal(kw, (dims[l], dims[l + 1]), jnp.float32),
            "b": 0.1 * jax.random.normal(kb, (dims[l + 1],), jnp.float32),
        }
        if l < NUM_LAYERS - 1:   # real (non-default) BatchNorm1d running stats, folded in
            kg, kbt, km, kv = jax.random.split(ks[8 + l], 4)
            entry["gamma"] = 1.0 + 0.1 * jax.random.normal(kg, (dims[l + 1],), jnp.float32)
            entry["beta"] = 0.1 * jax.random.normal(kbt, (dims[l + 1],), jnp.float32)
            entry["mean"] = 0.1 * jax.random.normal(km, (dims[l + 1],), jnp.float32)
            entry["var"] = jnp.abs(1.0 + 0.1 * jax.random.normal(kv, (dims[l + 1],), jnp.float32))
        params.append(entry)

    clause_weights = [CLAUSE_WEIGHT] * NUM_KENN_LAYERS

    out = ke_gcn_forward(x, edge_index, relations, params,
                         num_classes=C, clause_weights=clause_weights)
    out = jax.block_until_ready(out)

    ref = _reference_forward(x, edge_index, relations, params, C, clause_weights)

    assert out.shape == (N, C)
    assert bool(jnp.all(jnp.isfinite(out)))
    # bf16 matmul operands -> loose tolerance vs the pure-f32 reference
    assert bool(jnp.allclose(out, ref, rtol=0.1, atol=0.2)), \
        f"max abs diff {float(jnp.max(jnp.abs(out - ref)))}"
    print("KERNEL_OK")
</pallas_src>

<mosaic_0001>
module attributes {stable_mosaic.version = 11 : i64} {
  func.func @_mm_epilogue_kernel(%arg0: i32, %arg1: i32, %arg2: i32, %arg3: memref<128x256xbf16, #tpu.memory_space<vmem>>, %arg4: memref<256x128xbf16, #tpu.memory_space<vmem>>, %arg5: memref<1x128xf32, #tpu.memory_space<vmem>>, %arg6: memref<128x128xbf16, #tpu.memory_space<vmem>>, %arg7: memref<128x128xf32, #tpu.memory_space<vmem>>) attributes {dimension_semantics = [#tpu.dimension_semantics<parallel>, #tpu.dimension_semantics<parallel>, #tpu.dimension_semantics<arbitrary>], iteration_bounds = array<i64: 1, 1, 1>, scalar_prefetch = 0 : i64, scratch_operands = 1 : i64, tpu.core_type = #tpu.core_type<tc>, window_params = [{transform_indices = @transform_0, window_bounds = array<i64: 128, 256>}, {transform_indices = @transform_1, window_bounds = array<i64: 256, 128>}, {transform_indices = @transform_2, window_bounds = array<i64: 1, 128>}, {transform_indices = @transform_3, window_bounds = array<i64: 128, 128>}]} {
    %c0_i32 = arith.constant 0 : i32
    %0 = arith.cmpi eq, %arg2, %c0_i32 : i32
    %1 = arith.extui %0 : i1 to i32
    %c0_i32_0 = arith.constant 0 : i32
    %2 = arith.cmpi ne, %1, %c0_i32_0 : i32
    scf.if %2 {
      %cst_10 = arith.constant 0.000000e+00 : f32
      %12 = vector.broadcast %cst_10 : f32 to vector<128x128xf32>
      %c0_11 = arith.constant 0 : index
      %c0_12 = arith.constant 0 : index
      %13 = vector.load %arg7[%c0_11, %c0_12] : memref<128x128xf32, #tpu.memory_space<vmem>>, vector<128x128xf32>
      tpu.vector_store %arg7[%c0_11, %c0_12], %12 {strides = array<i32>} : memref<128x128xf32, #tpu.memory_space<vmem>>, vector<128x128xf32>,
    } else {
    }
    %c0 = arith.constant 0 : index
    %c0_1 = arith.constant 0 : index
    %3 = vector.load %arg7[%c0, %c0_1] : memref<128x128xf32, #tpu.memory_space<vmem>>, vector<128x128xf32>
    %c0_2 = arith.constant 0 : index
    %c0_3 = arith.constant 0 : index
    %4 = vector.load %arg3[%c0_2, %c0_3] : memref<128x256xbf16, #tpu.memory_space<vmem>>, vector<128x256xbf16>
    %c0_4 = arith.constant 0 : index
    %c0_5 = arith.constant 0 : index
    %5 = vector.load %arg4[%c0_4, %c0_5] : memref<256x128xbf16, #tpu.memory_space<vmem>>, vector<256x128xbf16>
    %cst = arith.constant dense<0.000000e+00> : vector<128x128xf32>
    %6 = tpu.matmul %4, %5, %cst {dimension_numbers = #tpu.dot_dimension_numbers<[1], [0], [0], [1], [0, 0, 1, 1], [], []>} : vector<128x256xbf16>, vector<256x128xbf16>, vector<128x128xf32> -> vector<128x128xf32>
    %7 = arith.addf %3, %6 : vector<128x128xf32>
    %c0_6 = arith.constant 0 : index
    %c0_7 = arith.constant 0 : index
    %8 = vector.load %arg7[%c0_6, %c0_7] : memref<128x128xf32, #tpu.memory_space<vmem>>, vector<128x128xf32>
    tpu.vector_store %arg7[%c0_6, %c0_7], %7 {strides = array<i32>} : memref<128x128xf32, #tpu.memory_space<vmem>>, vector<128x128xf32>,
    %c0_i32_8 = arith.constant 0 : i32
    %9 = arith.cmpi eq, %arg2, %c0_i32_8 : i32
    %10 = arith.extui %9 : i1 to i32
    %c0_i32_9 = arith.constant 0 : i32
    %11 = arith.cmpi ne, %10, %c0_i32_9 : i32
    scf.if %11 {
      %c0_10 = arith.constant 0 : index
      %c0_11 = arith.constant 0 : index
      %12 = vector.load %arg7[%c0_10, %c0_11] : memref<128x128xf32, #tpu.memory_space<vmem>>, vector<128x128xf32>
      %c0_12 = arith.constant 0 : index
      %c0_13 = arith.constant 0 : index
      %13 = vector.load %arg5[%c0_12, %c0_13] : memref<1x128xf32, #tpu.memory_space<vmem>>, vector<1x128xf32>
      %14 = vector.broadcast %13 : vector<1x128xf32> to vector<128x128xf32>
      %15 = arith.addf %12, %14 : vector<128x128xf32>
      %16 = arith.truncf %15 : vector<128x128xf32> to vector<128x128xbf16>
      %c0_14 = arith.constant 0 : index
      %c0_15 = arith.constant 0 : index
      %17 = vector.load %arg6[%c0_14, %c0_15] : memref<128x128xbf16, #tpu.memory_space<vmem>>, vector<128x128xbf16>
      tpu.vector_store %arg6[%c0_14, %c0_15], %16 {strides = array<i32>} : memref<128x128xbf16, #tpu.memory_space<vmem>>, vector<128x128xbf16>,
    } else {
    }
    return
  }
  func.func @transform_0(%arg0: i32, %arg1: i32, %arg2: i32) -> (i32, i32) {
    %c0_i32 = arith.constant 0 : i32
    return %arg0, %arg2 : i32, i32
  }
  func.func @transform_1(%arg0: i32, %arg1: i32, %arg2: i32) -> (i32, i32) {
    %c0_i32 = arith.constant 0 : i32
    return %arg2, %arg1 : i32, i32
  }
  func.func @transform_2(%arg0: i32, %arg1: i32, %arg2: i32) -> (i32, i32) {
    %c0_i32 = arith.constant 0 : i32
    %c0_i32_0 = arith.constant 0 : i32
    return %c0_i32, %arg1 : i32, i32
  }
  func.func @transform_3(%arg0: i32, %arg1: i32, %arg2: i32) -> (i32, i32) {
    %c0_i32 = arith.constant 0 : i32
    return %arg0, %arg1 : i32, i32
  }
}

</mosaic_0001>

<llo_original>
// kernel: tpu_custom_call.1
$region0: #{tpu_custom_call.1}
  #allocation0 [shape = 'u32[]', space=smem, size = 0x4, offset = 0x4, fixed_abs, tag = 'smem constant byte address 0x4 - core index']
  #allocation1 [shape = 'u32[144,128]{1,0:T(1,128)}', space=vmem, size = 0x12000, scoped, tag = 'internal scratch']
  #allocation2 [shape = 'f32[128,128]{1,0:T(8,128)}', space=vmem, size = 0x10000, scoped, tag = 'scratch operand']
  %s0 = inlined_call_operand.hbm [shape: bf16[128,256], index: 0, kind: input, shape index: {}]
  %s1 = inlined_call_operand.hbm [shape: bf16[256,128], index: 1, kind: input, shape index: {}]
  %s2 = inlined_call_operand.vmem [shape: f32[1,128], index: 2, kind: input, shape index: {}]
  %s3 = inlined_call_operand.hbm [shape: bf16[128,128], index: 3, kind: output, shape index: {}]
  %s4 = sld [smem:[#allocation0]]
  $region38: #{tpu_custom_call.1} parent=0
    _
  %s6 = ssub.s32 1, %s4
  %s7 = scalar_select 0, %s6, %s4
  $region1: #{tpu_custom_call.1} parent=0
    #allocation3 [shape = 'u8[65536]{0}', space=vmem, size = 0x10000, scoped, tag = 'input window, operand 0, single buffered']
    #allocation4 [shape = 's32[1]{0}', space=sflag, size = 0x4, scoped, tag = 'scoped memory for tpu_custom_call.1']
    #allocation5 [shape = 's32[1]{0}', space=sflag, size = 0x4, scoped, tag = 'scoped memory for tpu_custom_call.1']
    #allocation6 [shape = 'u8[65536]{0}', space=vmem, size = 0x10000, scoped, tag = 'input window, operand 1, single buffered']
    #allocation7 [shape = 's32[1]{0}', space=sflag, size = 0x4, scoped, tag = 'scoped memory for tpu_custom_call.1']
    #allocation8 [shape = 'u8[32768]{0}', space=vmem, size = 0x8000, scoped, tag = 'output window, operand 0, single buffered']
    %8 = vsyncpa [#allocation4], 0
    %9 = vsyncpa [#allocation7], 0
    %10 = vsyncpa [#allocation5], 0
    // Predicated region
    $region2: #{tpu_custom_call.1} parent=1 // pred_check
      _
    $region3: #{tpu_custom_call.1} parent=1 // pred_check_branch
      %12 = sbr.rel (0) target = $region5
    $region4: #{tpu_custom_call.1} parent=1 // pred_region
      %s14 = ssub.s32 2048, 2048
      %15 = vsyncadd [#allocation4], %s14
      %s16 = sshll.u32 [#allocation3], 4
      %s17 = int_to_ptr.vmem [resolvable:$true] %s16
      %22 = dma.hbm_to_vmem [thread:$0]  %s0, 2048, %s17, [#allocation4], 128, 128, 8
    $region5: #{tpu_custom_call.1} parent=1 // pred_fallthru
      _
    // Predicated region
    $region6: #{tpu_custom_call.1} parent=1 // pred_check
      _
    $region7: #{tpu_custom_call.1} parent=1 // pred_check_branch
      %24 = sbr.rel (0) target = $region9
    $region8: #{tpu_custom_call.1} parent=1 // pred_region
      %s26 = ssub.s32 2048, 2048
      %27 = vsyncadd [#allocation7], %s26
      %s28 = sshll.u32 [#allocation6], 4
      %s29 = int_to_ptr.vmem [resolvable:$true] %s28
      %34 = dma.hbm_to_vmem [thread:$0]  %s1, 2048, %s29, [#allocation7], 64, 64, 4
    $region9: #{tpu_custom_call.1} parent=1 // pred_fallthru
      _
    // Predicated region
    $region10: #{tpu_custom_call.1} parent=1 // pred_check
      _
    $region11: #{tpu_custom_call.1} parent=1 // pred_check_branch
      %36 = sbr.rel (0) target = $region13
    $region12: #{tpu_custom_call.1} parent=1 // pred_region
      _
    $region13: #{tpu_custom_call.1} parent=1 // pred_fallthru
      _
    // Predicated region
    $region14: #{tpu_custom_call.1} parent=1 // pred_check
      _
    $region15: #{tpu_custom_call.1} parent=1 // pred_check_branch
      %38 = sbr.rel (0) target = $region17
    $region16: #{tpu_custom_call.1} parent=1 // pred_region
      %39 = dma.done [#allocation4], 2048
    $region17: #{tpu_custom_call.1} parent=1 // pred_fallthru
      _
    // Predicated region
    $region18: #{tpu_custom_call.1} parent=1 // pred_check
      _
    $region19: #{tpu_custom_call.1} parent=1 // pred_check_branch
      %41 = sbr.rel (0) target = $region21
    $region20: #{tpu_custom_call.1} parent=1 // pred_region
      %42 = dma.done [#allocation7], 2048
    $region21: #{tpu_custom_call.1} parent=1 // pred_fallthru
      _
    %p44 = scmp.eq.s32.totalorder 0, 0
    // Predicated region
    $region22: #{tpu_custom_call.1} parent=1 // pred_check
      %p45 = pneg %p44
    $region23: #{tpu_custom_call.1} parent=1 // pred_check_branch
      %47 = sbr.rel (%p45) target = $region25
    $region24: #{tpu_custom_call.1} parent=1 // pred_region
      %48 = vst [vmem:[#allocation2] sm:$0xff] 0.0
      %49 = vst [vmem:[#allocation2 + $0x8] sm:$0xff] 0.0
      %50 = vst [vmem:[#allocation2 + $0x10] sm:$0xff] 0.0
      %51 = vst [vmem:[#allocation2 + $0x18] sm:$0xff] 0.0
      %52 = vst [vmem:[#allocation2 + $0x20] sm:$0xff] 0.0
      %53 = vst [vmem:[#allocation2 + $0x28] sm:$0xff] 0.0
      %54 = vst [vmem:[#allocation2 + $0x30] sm:$0xff] 0.0
      %55 = vst [vmem:[#allocation2 + $0x38] sm:$0xff] 0.0
      %56 = vst [vmem:[#allocation2 + $0x40] sm:$0xff] 0.0
      %57 = vst [vmem:[#allocation2 + $0x48] sm:$0xff] 0.0
      %58 = vst [vmem:[#allocation2 + $0x50] sm:$0xff] 0.0
      %59 = vst [vmem:[#allocation2 + $0x58] sm:$0xff] 0.0
      %60 = vst [vmem:[#allocation2 + $0x60] sm:$0xff] 0.0
      %61 = vst [vmem:[#allocation2 + $0x68] sm:$0xff] 0.0
      %62 = vst [vmem:[#allocation2 + $0x70] sm:$0xff] 0.0
      %63 = vst [vmem:[#allocation2 + $0x78] sm:$0xff] 0.0
    $region25: #{tpu_custom_call.1} parent=1 // pred_fallthru
      _
    %v64 = vld [vmem:[#allocation2] sm:$0xff]
    %v65 = vld [vmem:[#allocation2 + $0x8] sm:$0xff]
    %v66 = vld [vmem:[#allocation2 + $0x10] sm:$0xff]
    %v67 = vld [vmem:[#allocation2 + $0x18] sm:$0xff]
    %v68 = vld [vmem:[#allocation2 + $0x20] sm:$0xff]
    %v69 = vld [vmem:[#allocation2 + $0x28] sm:$0xff]
    %v70 = vld [vmem:[#allocation2 + $0x30] sm:$0xff]
    %v71 = vld [vmem:[#allocation2 + $0x38] sm:$0xff]
    %v72 = vld [vmem:[#allocation2 + $0x40] sm:$0xff]
    %v73 = vld [vmem:[#allocation2 + $0x48] sm:$0xff]
    %v74 = vld [vmem:[#allocation2 + $0x50] sm:$0xff]
    %v75 = vld [vmem:[#allocation2 + $0x58] sm:$0xff]
    %v76 = vld [vmem:[#allocation2 + $0x60] sm:$0xff]
    %v77 = vld [vmem:[#allocation2 + $0x68] sm:$0xff]
    %v78 = vld [vmem:[#allocation2 + $0x70] sm:$0xff]
    %v79 = vld [vmem:[#allocation2 + $0x78] sm:$0xff]
    %v80 = vld [vmem:[#allocation3] sm:$0xff]
    %v81 = vld [vmem:[#allocation3 + $0x8] sm:$0xff]
    %v82 = vld [vmem:[#allocation3 + $0x10] sm:$0xff]
    %v83 = vld [vmem:[#allocation3 + $0x18] sm:$0xff]
    %v84 = vld [vmem:[#allocation3 + $0x20] sm:$0xff]
    %v85 = vld [vmem:[#allocation3 + $0x28] sm:$0xff]
    %v86 = vld [vmem:[#allocation3 + $0x30] sm:$0xff]
    %v87 = vld [vmem:[#allocation3 + $0x38] sm:$0xff]
    %v88 = vld [vmem:[#allocation3 + $0x40] sm:$0xff]
    %v89 = vld [vmem:[#allocation3 + $0x48] sm:$0xff]
    %v90 = vld [vmem:[#allocation3 + $0x50] sm:$0xff]
    %v91 = vld [vmem:[#allocation3 + $0x58] sm:$0xff]
    %v92 = vld [vmem:[#allocation3 + $0x60] sm:$0xff]
    %v93 = vld [vmem:[#allocation3 + $0x68] sm:$0xff]
    %v94 = vld [vmem:[#allocation3 + $0x70] sm:$0xff]
    %v95 = vld [vmem:[#allocation3 + $0x78] sm:$0xff]
    %v96 = vld [vmem:[#allocation6] sm:$0xf]
    %v97 = vld [vmem:[#allocation6 + $0x4] sm:$0xf]
    %v98 = vld [vmem:[#allocation6 + $0x8] sm:$0xf]
    %v99 = vld [vmem:[#allocation6 + $0xc] sm:$0xf]
    %v100 = vld [vmem:[#allocation6 + $0x10] sm:$0xf]
    %v101 = vld [vmem:[#allocation6 + $0x14] sm:$0xf]
    %v102 = vld [vmem:[#allocation6 + $0x18] sm:$0xf]
    %v103 = vld [vmem:[#allocation6 + $0x1c] sm:$0xf]
    %v104 = vld [vmem:[#allocation6 + $0x20] sm:$0xf]
    %v105 = vld [vmem:[#allocation6 + $0x24] sm:$0xf]
    %v106 = vld [vmem:[#allocation6 + $0x28] sm:$0xf]
    %v107 = vld [vmem:[#allocation6 + $0x2c] sm:$0xf]
    %v108 = vld [vmem:[#allocation6 + $0x30] sm:$0xf]
    %v109 = vld [vmem:[#allocation6 + $0x34] sm:$0xf]
    %v110 = vld [vmem:[#allocation6 + $0x38] sm:$0xf]
    %v111 = vld [vmem:[#allocation6 + $0x3c] sm:$0xf]
    %v112 = vld [vmem:[#allocation6 + $0x40] sm:$0xf]
    %v113 = vld [vmem:[#allocation6 + $0x44] sm:$0xf]
    %v114 = vld [vmem:[#allocation6 + $0x48] sm:$0xf]
    %v115 = vld [vmem:[#allocation6 + $0x4c] sm:$0xf]
    %v116 = vld [vmem:[#allocation6 + $0x50] sm:$0xf]
    %v117 = vld [vmem:[#allocation6 + $0x54] sm:$0xf]
    %v118 = vld [vmem:[#allocation6 + $0x58] sm:$0xf]
    %v119 = vld [vmem:[#allocation6 + $0x5c] sm:$0xf]
    %v120 = vld [vmem:[#allocation6 + $0x60] sm:$0xf]
    %v121 = vld [vmem:[#allocation6 + $0x64] sm:$0xf]
    %v122 = vld [vmem:[#allocation6 + $0x68] sm:$0xf]
    %v123 = vld [vmem:[#allocation6 + $0x6c] sm:$0xf]
    %v124 = vld [vmem:[#allocation6 + $0x70] sm:$0xf]
    %v125 = vld [vmem:[#allocation6 + $0x74] sm:$0xf]
    %v126 = vld [vmem:[#allocation6 + $0x78] sm:$0xf]
    %v127 = vld [vmem:[#allocation6 + $0x7c] sm:$0xf]
    %v144 = vunpack.c.l.b16 %v80
    %v145 = vunpack.c.h.b16 %v80
    %v146 = vunpack.c.l.b16 %v81
    %v147 = vunpack.c.h.b16 %v81
    %v148 = vunpack.c.l.b16 %v82
    %v149 = vunpack.c.h.b16 %v82
    %v150 = vunpack.c.l.b16 %v83
    %v151 = vunpack.c.h.b16 %v83
    %v152 = vunpack.c.l.b16 %v84
    %v153 = vunpack.c.h.b16 %v84
    %v154 = vunpack.c.l.b16 %v85
    %v155 = vunpack.c.h.b16 %v85
    %v156 = vunpack.c.l.b16 %v86
    %v157 = vunpack.c.h.b16 %v86
    %v158 = vunpack.c.l.b16 %v87
    %v159 = vunpack.c.h.b16 %v87
    %v160 = vunpack.c.l.b16 %v88
    %v161 = vunpack.c.h.b16 %v88
    %v162 = vunpack.c.l.b16 %v89
    %v163 = vunpack.c.h.b16 %v89
    %v164 = vunpack.c.l.b16 %v90
    %v165 = vunpack.c.h.b16 %v90
    %v166 = vunpack.c.l.b16 %v91
    %v167 = vunpack.c.h.b16 %v91
    %v168 = vunpack.c.l.b16 %v92
    %v169 = vunpack.c.h.b16 %v92
    %v170 = vunpack.c.l.b16 %v93
    %v171 = vunpack.c.h.b16 %v93
    %v172 = vunpack.c.l.b16 %v94
    %v173 = vunpack.c.h.b16 %v94
    %v174 = vunpack.c.l.b16 %v95
    %v175 = vunpack.c.h.b16 %v95
    %v176 = vpack.c.b16 %v146, %v144
    %v177 = vpack.c.b16 %v147, %v145
    %v178 = vpack.c.b16 %v150, %v148
    %v179 = vpack.c.b16 %v151, %v149
    %v180 = vpack.c.b16 %v154, %v152
    %v181 = vpack.c.b16 %v155, %v153
    %v182 = vpack.c.b16 %v158, %v156
    %v183 = vpack.c.b16 %v159, %v157
    %v184 = vpack.c.b16 %v162, %v160
    %v185 = vpack.c.b16 %v163, %v161
    %v186 = vpack.c.b16 %v166, %v164
    %v187 = vpack.c.b16 %v167, %v165
    %v188 = vpack.c.b16 %v170, %v168
    %v189 = vpack.c.b16 %v171, %v169
    %v190 = vpack.c.b16 %v174, %v172
    %v191 = vpack.c.b16 %v175, %v173
    %v240 = vunpack.c.l.b16 %v96
    %v241 = vunpack.c.l.b16 %v97
    %v242 = vunpack.c.l.b16 %v98
    %v243 = vunpack.c.l.b16 %v99
    %v244 = vunpack.c.l.b16 %v100
    %v245 = vunpack.c.l.b16 %v101
    %v246 = vunpack.c.l.b16 %v102
    %v247 = vunpack.c.l.b16 %v103
    %v248 = vunpack.c.l.b16 %v104
    %v249 = vunpack.c.l.b16 %v105
    %v250 = vunpack.c.l.b16 %v106
    %v251 = vunpack.c.l.b16 %v107
    %v252 = vunpack.c.l.b16 %v108
    %v253 = vunpack.c.l.b16 %v109
    %v254 = vunpack.c.l.b16 %v110
    %v255 = vunpack.c.l.b16 %v111
    %v256 = vunpack.c.l.b16 %v112
    %v257 = vunpack.c.l.b16 %v113
    %v258 = vunpack.c.l.b16 %v114
    %v259 = vunpack.c.l.b16 %v115
    %v260 = vunpack.c.l.b16 %v116
    %v261 = vunpack.c.l.b16 %v117
    %v262 = vunpack.c.l.b16 %v118
    %v263 = vunpack.c.l.b16 %v119
    %v264 = vunpack.c.l.b16 %v120
    %v265 = vunpack.c.l.b16 %v121
    %v266 = vunpack.c.l.b16 %v122
    %v267 = vunpack.c.l.b16 %v123
    %v268 = vunpack.c.l.b16 %v124
    %v269 = vunpack.c.l.b16 %v125
    %v270 = vunpack.c.l.b16 %v126
    %v271 = vunpack.c.l.b16 %v127
    %v272 = vpack.c.b16 %v241, %v240
    %v273 = vpack.c.b16 %v243, %v242
    %v274 = vpack.c.b16 %v245, %v244
    %v275 = vpack.c.b16 %v247, %v246
    %v276 = vpack.c.b16 %v249, %v248
    %v277 = vpack.c.b16 %v251, %v250
    %v278 = vpack.c.b16 %v253, %v252
    %v279 = vpack.c.b16 %v255, %v254
    %v280 = vpack.c.b16 %v257, %v256
    %v281 = vpack.c.b16 %v259, %v258
    %v282 = vpack.c.b16 %v261, %v260
    %v283 = vpack.c.b16 %v263, %v262
    %v284 = vpack.c.b16 %v265, %v264
    %v285 = vpack.c.b16 %v267, %v266
    %v286 = vpack.c.b16 %v269, %v268
    %v287 = vpack.c.b16 %v271, %v270
    %304 = vmatprep.subr.bf16.mxu0 0
    %305 = vmatpush1.bf16.msra.mxu0 %v272
    %306 = vmatprep.subr.bf16.mxu0 0
    %307 = vmatpush1.bf16.msra.mxu0 %v273
    %308 = vmatprep.subr.bf16.mxu0 0
    %309 = vmatpush1.bf16.msra.mxu0 %v274
    %310 = vmatprep.subr.bf16.mxu0 0
    %311 = vmatpush1.bf16.msra.mxu0 %v275
    %312 = vmatprep.subr.bf16.mxu0 0
    %313 = vmatpush1.bf16.msra.mxu0 %v276
    %314 = vmatprep.subr.bf16.mxu0 0
    %315 = vmatpush1.bf16.msra.mxu0 %v277
    %316 = vmatprep.subr.bf16.mxu0 0
    %317 = vmatpush1.bf16.msra.mxu0 %v278
    %318 = vmatprep.subr.bf16.mxu0 0
    %319 = vmatpush1.bf16.msra.mxu0 %v279
    %320 = vmatprep.subr.bf16.mxu0 0
    %321 = vmatpush1.bf16.msra.mxu0 %v280
    %322 = vmatprep.subr.bf16.mxu0 0
    %323 = vmatpush1.bf16.msra.mxu0 %v281
    %324 = vmatprep.subr.bf16.mxu0 0
    %325 = vmatpush1.bf16.msra.mxu0 %v282
    %326 = vmatprep.subr.bf16.mxu0 0
    %327 = vmatpush1.bf16.msra.mxu0 %v283
    %328 = vmatprep.subr.bf16.mxu0 0
    %329 = vmatpush1.bf16.msra.mxu0 %v284
    %330 = vmatprep.subr.bf16.mxu0 0
    %331 = vmatpush1.bf16.msra.mxu0 %v285
    %332 = vmatprep.subr.bf16.mxu0 0
    %333 = vmatpush1.bf16.msra.mxu0 %v286
    %334 = vmatprep.subr.bf16.mxu0 0
    %335 = vmatpush1.bf16.msra.mxu0 %v287
    %336 = vmatprep.mubr.bf16.mxu0 %v177
    %337 = vmatmul.mubr.bf16.gmra.mrb[0].mxu0 %v176
    %v338 = vpop.f32.mrb[0].mxu0
    %v339 = vadd.f32 0.0, %v338
    %v340 = vpop.f32.mrb[0].mxu0
    %v341 = vpop.f32.mrb[0].mxu0
    %v342 = vadd.f32 0.0, %v341
    %v343 = vpop.f32.mrb[0].mxu0
    %344 = vmatprep.mubr.bf16.mxu0 %v179
    %345 = vmatmul.mubr.bf16.gmra.mrb[0].mxu0 %v178
    %v346 = vpop.f32.mrb[0].mxu0
    %v347 = vadd.f32 0.0, %v346
    %v348 = vpop.f32.mrb[0].mxu0
    %v349 = vpop.f32.mrb[0].mxu0
    %v350 = vadd.f32 0.0, %v349
    %v351 = vpop.f32.mrb[0].mxu0
    %352 = vmatprep.mubr.bf16.mxu0 %v181
    %353 = vmatmul.mubr.bf16.gmra.mrb[0].mxu0 %v180
    %v354 = vpop.f32.mrb[0].mxu0
    %v355 = vadd.f32 0.0, %v354
    %v356 = vpop.f32.mrb[0].mxu0
    %v357 = vpop.f32.mrb[0].mxu0
    %v358 = vadd.f32 0.0, %v357
    %v359 = vpop.f32.mrb[0].mxu0
    %360 = vmatprep.mubr.bf16.mxu0 %v183
    %361 = vmatmul.mubr.bf16.gmra.mrb[0].mxu0 %v182
    %v362 = vpop.f32.mrb[0].mxu0
    %v363 = vadd.f32 0.0, %v362
    %v364 = vpop.f32.mrb[0].mxu0
    %v365 = vpop.f32.mrb[0].mxu0
    %v366 = vadd.f32 0.0, %v365
    %v367 = vpop.f32.mrb[0].mxu0
    %368 = vmatprep.mubr.bf16.mxu0 %v185
    %369 = vmatmul.mubr.bf16.gmra.mrb[0].mxu0 %v184
    %v370 = vpop.f32.mrb[0].mxu0
    %v371 = vadd.f32 0.0, %v370
    %v372 = vpop.f32.mrb[0].mxu0
    %v373 = vpop.f32.mrb[0].mxu0
    %v374 = vadd.f32 0.0, %v373
    %v375 = vpop.f32.mrb[0].mxu0
    %376 = vmatprep.mubr.bf16.mxu0 %v187
    %377 = vmatmul.mubr.bf16.gmra.mrb[0].mxu0 %v186
    %v378 = vpop.f32.mrb[0].mxu0
    %v379 = vadd.f32 0.0, %v378
    %v380 = vpop.f32.mrb[0].mxu0
    %v381 = vpop.f32.mrb[0].mxu0
    %v382 = vadd.f32 0.0, %v381
    %v383 = vpop.f32.mrb[0].mxu0
    %384 = vmatprep.mubr.bf16.mxu0 %v189
    %385 = vmatmul.mubr.bf16.gmra.mrb[0].mxu0 %v188
    %v386 = vpop.f32.mrb[0].mxu0
    %v387 = vadd.f32 0.0, %v386
    %v388 = vpop.f32.mrb[0].mxu0
    %v389 = vpop.f32.mrb[0].mxu0
    %v390 = vadd.f32 0.0, %v389
    %v391 = vpop.f32.mrb[0].mxu0
    %392 = vmatprep.mubr.bf16.mxu0 %v191
    %393 = vmatmul.mubr.bf16.gmra.mrb[0].mxu0 %v190
    %v394 = vpop.f32.mrb[0].mxu0
    %v395 = vadd.f32 0.0, %v394
    %v396 = vpop.f32.mrb[0].mxu0
    %v397 = vpop.f32.mrb[0].mxu0
    %v398 = vadd.f32 0.0, %v397
    %v399 = vpop.f32.mrb[0].mxu0
    %400 = vdwg.mxu0
    %v401 = vadd.f32 %v64, %v339
    %v402 = vadd.f32 %v65, %v342
    %v403 = vadd.f32 %v66, %v347
    %v404 = vadd.f32 %v67, %v350
    %v405 = vadd.f32 %v68, %v355
    %v406 = vadd.f32 %v69, %v358
    %v407 = vadd.f32 %v70, %v363
    %v408 = vadd.f32 %v71, %v366
    %v409 = vadd.f32 %v72, %v371
    %v410 = vadd.f32 %v73, %v374
    %v411 = vadd.f32 %v74, %v379
    %v412 = vadd.f32 %v75, %v382
    %v413 = vadd.f32 %v76, %v387
    %v414 = vadd.f32 %v77, %v390
    %v415 = vadd.f32 %v78, %v395
    %v416 = vadd.f32 %v79, %v398
    %417 = vst [vmem:[#allocation2] sm:$0xff] %v401
    %418 = vst [vmem:[#allocation2 + $0x8] sm:$0xff] %v402
    %419 = vst [vmem:[#allocation2 + $0x10] sm:$0xff] %v403
    %420 = vst [vmem:[#allocation2 + $0x18] sm:$0xff] %v404
    %421 = vst [vmem:[#allocation2 + $0x20] sm:$0xff] %v405
    %422 = vst [vmem:[#allocation2 + $0x28] sm:$0xff] %v406
    %423 = vst [vmem:[#allocation2 + $0x30] sm:$0xff] %v407
    %424 = vst [vmem:[#allocation2 + $0x38] sm:$0xff] %v408
    %425 = vst [vmem:[#allocation2 + $0x40] sm:$0xff] %v409
    %426 = vst [vmem:[#allocation2 + $0x48] sm:$0xff] %v410
    %427 = vst [vmem:[#allocation2 + $0x50] sm:$0xff] %v411
    %428 = vst [vmem:[#allocation2 + $0x58] sm:$0xff] %v412
    %429 = vst [vmem:[#allocation2 + $0x60] sm:$0xff] %v413
    %430 = vst [vmem:[#allocation2 + $0x68] sm:$0xff] %v414
    %431 = vst [vmem:[#allocation2 + $0x70] sm:$0xff] %v415
    %432 = vst [vmem:[#allocation2 + $0x78] sm:$0xff] %v416
    // Predicated region
    $region26: #{tpu_custom_call.1} parent=1 // pred_check
      %p433 = pneg %p44
    $region27: #{tpu_custom_call.1} parent=1 // pred_check_branch
      %435 = sbr.rel (%p433) target = $region29
    $region28: #{tpu_custom_call.1} parent=1 // pred_region
      %v436 = vld [vmem:[#allocation2] sm:$0xff]
      %v437 = vld [vmem:[#allocation2 + $0x8] sm:$0xff]
      %v438 = vld [vmem:[#allocation2 + $0x10] sm:$0xff]
      %v439 = vld [vmem:[#allocation2 + $0x18] sm:$0xff]
      %v440 = vld [vmem:[#allocation2 + $0x20] sm:$0xff]
      %v441 = vld [vmem:[#allocation2 + $0x28] sm:$0xff]
      %v442 = vld [vmem:[#allocation2 + $0x30] sm:$0xff]
      %v443 = vld [vmem:[#allocation2 + $0x38] sm:$0xff]
      %v444 = vld [vmem:[#allocation2 + $0x40] sm:$0xff]
      %v445 = vld [vmem:[#allocation2 + $0x48] sm:$0xff]
      %v446 = vld [vmem:[#allocation2 + $0x50] sm:$0xff]
      %v447 = vld [vmem:[#allocation2 + $0x58] sm:$0xff]
      %v448 = vld [vmem:[#allocation2 + $0x60] sm:$0xff]
      %v449 = vld [vmem:[#allocation2 + $0x68] sm:$0xff]
      %v450 = vld [vmem:[#allocation2 + $0x70] sm:$0xff]
      %v451 = vld [vmem:[#allocation2 + $0x78] sm:$0xff]
      %v452 = vld [vmem:[%s2] sm:$0x1]
      %v454 = vlaneseq
      %v455 = vshrl.u32 %v454, 7
      %v456 = vsub.s32 0, %v455
      %v457 = vrot.slane %v452, %v456
      %v459 = vadd.f32 %v436, %v457
      %v460 = vadd.f32 %v437, %v457
      %v461 = vadd.f32 %v438, %v457
      %v462 = vadd.f32 %v439, %v457
      %v463 = vadd.f32 %v440, %v457
      %v464 = vadd.f32 %v441, %v457
      %v465 = vadd.f32 %v442, %v457
      %v466 = vadd.f32 %v443, %v457
      %v467 = vadd.f32 %v444, %v457
      %v468 = vadd.f32 %v445, %v457
      %v469 = vadd.f32 %v446, %v457
      %v470 = vadd.f32 %v447, %v457
      %v471 = vadd.f32 %v448, %v457
      %v472 = vadd.f32 %v449, %v457
      %v473 = vadd.f32 %v450, %v457
      %v474 = vadd.f32 %v451, %v457
      %v475 = vpack.c.bf16 %v460, %v459
      %v476 = vpack.c.bf16 %v462, %v461
      %v477 = vpack.c.bf16 %v464, %v463
      %v478 = vpack.c.bf16 %v466, %v465
      %v479 = vpack.c.bf16 %v468, %v467
      %v480 = vpack.c.bf16 %v470, %v469
      %v481 = vpack.c.bf16 %v472, %v471
      %v482 = vpack.c.bf16 %v474, %v473
      %v491 = vunpack.c.l.b16 %v475
      %v492 = vunpack.c.h.b16 %v475
      %v493 = vunpack.c.l.b16 %v476
      %v494 = vunpack.c.h.b16 %v476
      %v495 = vunpack.c.l.b16 %v477
      %v496 = vunpack.c.h.b16 %v477
      %v497 = vunpack.c.l.b16 %v478
      %v498 = vunpack.c.h.b16 %v478
      %v499 = vunpack.c.l.b16 %v479
      %v500 = vunpack.c.h.b16 %v479
      %v501 = vunpack.c.l.b16 %v480
      %v502 = vunpack.c.h.b16 %v480
      %v503 = vunpack.c.l.b16 %v481
      %v504 = vunpack.c.h.b16 %v481
      %v505 = vunpack.c.l.b16 %v482
      %v506 = vunpack.c.h.b16 %v482
      %v507 = vpack.c.b16 %v491, %v491
      %v508 = vpack.c.b16 %v492, %v492
      %v509 = vpack.c.b16 %v493, %v493
      %v510 = vpack.c.b16 %v494, %v494
      %v511 = vpack.c.b16 %v495, %v495
      %v512 = vpack.c.b16 %v496, %v496
      %v513 = vpack.c.b16 %v497, %v497
      %v514 = vpack.c.b16 %v498, %v498
      %v515 = vpack.c.b16 %v499, %v499
      %v516 = vpack.c.b16 %v500, %v500
      %v517 = vpack.c.b16 %v501, %v501
      %v518 = vpack.c.b16 %v502, %v502
      %v519 = vpack.c.b16 %v503, %v503
      %v520 = vpack.c.b16 %v504, %v504
      %v521 = vpack.c.b16 %v505, %v505
      %v522 = vpack.c.b16 %v506, %v506
      %539 = vst [vmem:[#allocation8] sm:$0xf] %v507
      %540 = vst [vmem:[#allocation8 + $0x4] sm:$0xf] %v508
      %541 = vst [vmem:[#allocation8 + $0x8] sm:$0xf] %v509
      %542 = vst [vmem:[#allocation8 + $0xc] sm:$0xf] %v510
      %543 = vst [vmem:[#allocation8 + $0x10] sm:$0xf] %v511
      %544 = vst [vmem:[#allocation8 + $0x14] sm:$0xf] %v512
      %545 = vst [vmem:[#allocation8 + $0x18] sm:$0xf] %v513
      %546 = vst [vmem:[#allocation8 + $0x1c] sm:$0xf] %v514
      %547 = vst [vmem:[#allocation8 + $0x20] sm:$0xf] %v515
      %548 = vst [vmem:[#allocation8 + $0x24] sm:$0xf] %v516
      %549 = vst [vmem:[#allocation8 + $0x28] sm:$0xf] %v517
      %550 = vst [vmem:[#allocation8 + $0x2c] sm:$0xf] %v518
      %551 = vst [vmem:[#allocation8 + $0x30] sm:$0xf] %v519
      %552 = vst [vmem:[#allocation8 + $0x34] sm:$0xf] %v520
      %553 = vst [vmem:[#allocation8 + $0x38] sm:$0xf] %v521
      %554 = vst [vmem:[#allocation8 + $0x3c] sm:$0xf] %v522
    $region29: #{tpu_custom_call.1} parent=1 // pred_fallthru
      _
    // Predicated region
    $region30: #{tpu_custom_call.1} parent=1 // pred_check
      _
    $region31: #{tpu_custom_call.1} parent=1 // pred_check_branch
      %556 = sbr.rel (0) target = $region33
    $region32: #{tpu_custom_call.1} parent=1 // pred_region
      %s558 = ssub.s32 1024, 1024
      %559 = vsyncadd [#allocation5], %s558
      %s560 = sshll.u32 [#allocation8], 4
      %s561 = int_to_ptr.vmem [resolvable:$true] %s560
      %566 = dma.vmem_to_hbm [thread:$0]  %s561, 1024, %s3, [#allocation5], 64, 64, 4
    $region33: #{tpu_custom_call.1} parent=1 // pred_fallthru
      _
    // Predicated region
    $region34: #{tpu_custom_call.1} parent=1 // pred_check
      _
    $region35: #{tpu_custom_call.1} parent=1 // pred_check_branch
      %568 = sbr.rel (0) target = $region37
    $region36: #{tpu_custom_call.1} parent=1 // pred_region
      %569 = dma.done [#allocation5], 1024
    $region37: #{tpu_custom_call.1} parent=1 // pred_fallthru
      _
    %570 = vsyncpa [#allocation4], 1
    %571 = vsyncpa [#allocation7], 1
    %572 = vsyncpa [#allocation5], 1

</llo_original>
